<compile_context>
chip_gen: v6e
topology: v6e:2x2x1
jax: 0.10.0
libtpu: 0.0.40
codegen_flags: <defaults>
</compile_context>

<pallas_src>
import jax
import jax.numpy as jnp
from jax.experimental import pallas as pl
from jax.experimental.pallas import tpu as pltpu

LANES = 128


def _cdiv(a, b):
    return -(-a // b)


def _round_up(a, b):
    return _cdiv(a, b) * b


def _nnre_partial_kernel(logits_ref, targets_ref, out_ref):
    """Accumulates per-lane partial sums needed by the NNRE loss.

    out_ref is the per-shard (8, 128) accumulator (resident across the inner
    grid axis).  Rows:
      0: count of positive examples
      1: count of unlabeled examples
      2: sum_{unlabeled} sigmoid(x)    (= loss(x, -1))
      3: sum_{positive}  sigmoid(x)    (= loss(x, -1))
      4..7: untouched (zeroed at init)
    """
    @pl.when(pl.program_id(1) == 0)
    def _():
        out_ref[...] = jnp.zeros_like(out_ref)

    x = logits_ref[...]                                # (block_rows, 128) f32
    t = targets_ref[...].astype(jnp.float32)           # int8 -> f32 in-register

    pos = (t == 1.0).astype(jnp.float32)
    unl = (t == -1.0).astype(jnp.float32)
    sig = jax.nn.sigmoid(x)                            # loss(x, -1) = sigmoid(x)

    out_ref[0:1, :] += jnp.sum(pos, axis=0, keepdims=True)
    out_ref[1:2, :] += jnp.sum(unl, axis=0, keepdims=True)
    out_ref[2:3, :] += jnp.sum(unl * sig, axis=0, keepdims=True)
    out_ref[3:4, :] += jnp.sum(pos * sig, axis=0, keepdims=True)


def nnre_loss(logits, targets, prior, gamma=1.0, beta=0.0, transform=True,
              block_rows=1024, num_shards=2):
    """JAX/Pallas equivalent of NNRELoss.forward(logits, targets)."""
    assert logits.shape == targets.shape
    x = logits.reshape(-1).astype(jnp.float32)
    t = targets.reshape(-1)
    n = x.shape[0]

    # Encode targets as int8: +1 positive, -1 unlabeled, 0 neither.
    # For transform=True this matches 2*sign(t)-1 semantics (t>0 -> +1,
    # t==0 -> -1, t<0 -> neither).  Padding value 0 is the "neither" sentinel,
    # which removes the need for a separate validity mask.
    if transform:
        enc = jnp.where(t > 0, jnp.int8(1),
                        jnp.where(t == 0, jnp.int8(-1), jnp.int8(0)))
    else:
        enc = jnp.where(t == 1, jnp.int8(1),
                        jnp.where(t == -1, jnp.int8(-1), jnp.int8(0)))

    # Tiling: rows of 128 lanes; block rows a multiple of 32 (int8 tiling)
    # and capped so tiny inputs are not massively over-padded.
    rows_needed = max(1, _cdiv(n, LANES))
    br = max(32, min(block_rows, _round_up(rows_needed, 32)))
    tiles = _cdiv(rows_needed, br)
    tiles_per_shard = _cdiv(tiles, num_shards)
    total_tiles = tiles_per_shard * num_shards
    padded_rows = total_tiles * br
    padded = padded_rows * LANES

    pad = padded - n
    x2 = jnp.pad(x, (0, pad)).reshape(padded_rows, LANES)
    t2 = jnp.pad(enc, (0, pad)).reshape(padded_rows, LANES)   # pad -> 0 sentinel

    partials = pl.pallas_call(
        _nnre_partial_kernel,
        out_shape=jax.ShapeDtypeStruct((num_shards, 8, LANES), jnp.float32),
        grid_spec=pltpu.PrefetchScalarGridSpec(
            num_scalar_prefetch=0,
            grid=(num_shards, tiles_per_shard),
            in_specs=[
                pl.BlockSpec((br, LANES),
                             lambda s, i: (s * tiles_per_shard + i, 0)),
                pl.BlockSpec((br, LANES),
                             lambda s, i: (s * tiles_per_shard + i, 0)),
            ],
            out_specs=pl.BlockSpec((pl.Squeezed(), 8, LANES),
                                   lambda s, i: (s, 0, 0)),
        ),
        compiler_params=pltpu.CompilerParams(
            dimension_semantics=("parallel", "arbitrary")),
    )(x2, t2)

    sums = jnp.sum(partials, axis=(0, 2))                     # (8,)
    n_positive = jnp.maximum(1.0, sums[0])
    n_unlabeled = jnp.maximum(1.0, sums[1])
    R_un = sums[2] / n_unlabeled
    R_pn = sums[3] / n_positive
    # sigmoid(-x) = 1 - sigmoid(x)  =>  sum_pos sigmoid(-x) = count_pos - sum_pos sigmoid(x)
    R_pp = (sums[0] - sums[3]) / n_positive

    R_p = prior * R_pp
    R_n = R_un - prior * R_pn
    return jnp.where(R_n >= -beta, R_p + R_n, -gamma * R_n)


def _reference(logits, targets, prior, gamma=1.0, beta=0.0, transform=True):
    """Pure-JAX reference mirroring the PyTorch forward."""
    x = logits.reshape(-1).astype(jnp.float32)
    t = targets.reshape(-1).astype(jnp.float32)
    if transform:
        t = 2.0 * jnp.sign(t) - 1.0
    pos = (t == 1.0)
    unl = (t == -1.0)
    n_pos = jnp.maximum(1.0, jnp.sum(pos).astype(jnp.float32))
    n_unl = jnp.maximum(1.0, jnp.sum(unl).astype(jnp.float32))
    R_un = jnp.sum(jnp.where(unl, jax.nn.sigmoid(x), 0.0)) / n_unl
    R_pn = jnp.sum(jnp.where(pos, jax.nn.sigmoid(x), 0.0)) / n_pos
    R_pp = jnp.sum(jnp.where(pos, jax.nn.sigmoid(-x), 0.0)) / n_pos
    R_p = prior * R_pp
    R_n = R_un - prior * R_pn
    return jnp.where(R_n >= -beta, R_p + R_n, -gamma * R_n)


if __name__ == "__main__":
    key = jax.random.PRNGKey(0)
    k1, k2 = jax.random.split(key)

    # Small shapes consistent with the module: logits/targets share a shape.
    shape = (2, 4, 16, 16)
    logits = jax.random.normal(k1, shape, dtype=jnp.float32)
    # PU-style targets: 1 = positive, 0 = unlabeled (transform maps 0 -> -1).
    targets = jax.random.bernoulli(k2, p=0.3, shape=shape).astype(jnp.float32)

    # prior would normally come from TIcE.estimate(); fixed deterministically.
    # TODO(synk): TIcE prior estimation (decision-tree / bitarray CPU code) has
    # no Pallas equivalent; prior is supplied as a constant instead.
    prior = 0.3

    out = nnre_loss(logits, targets, prior, gamma=1.0, beta=0.0, transform=True)
    out = jax.block_until_ready(out)

    ref = _reference(logits, targets, prior)
    assert jnp.allclose(out, ref, rtol=1e-5, atol=1e-6), (out, ref)

    print("KERNEL_OK")
</pallas_src>

<mosaic_0001>
module attributes {stable_mosaic.version = 11 : i64} {
  func.func @_nnre_partial_kernel(%arg0: i32, %arg1: i32, %arg2: memref<32x128xf32, #tpu.memory_space<vmem>>, %arg3: memref<32x128xi8, #tpu.memory_space<vmem>>, %arg4: memref<1x8x128xf32, #tpu.memory_space<vmem>>) attributes {dimension_semantics = [#tpu.dimension_semantics<parallel>, #tpu.dimension_semantics<arbitrary>], iteration_bounds = array<i64: 2, 1>, scalar_prefetch = 0 : i64, scratch_operands = 0 : i64, tpu.core_type = #tpu.core_type<tc>, window_params = [{transform_indices = @transform_0, window_bounds = array<i64: 32, 128>}, {transform_indices = @transform_1, window_bounds = array<i64: 32, 128>}, {transform_indices = @transform_2, window_bounds = array<i64: 1, 8, 128>}]} {
    %c0_i32 = arith.constant 0 : i32
    %0 = arith.cmpi eq, %arg1, %c0_i32 : i32
    %1 = arith.extui %0 : i1 to i32
    %c0_i32_0 = arith.constant 0 : i32
    %2 = arith.cmpi ne, %1, %c0_i32_0 : i32
    scf.if %2 {
      %cst_31 = arith.constant 0.000000e+00 : f32
      %53 = vector.broadcast %cst_31 : f32 to vector<8x128xf32>
      %c0_32 = arith.constant 0 : index
      %c0_33 = arith.constant 0 : index
      %c0_34 = arith.constant 0 : index
      %54 = vector.load %arg4[%c0_32, %c0_33, %c0_34] : memref<1x8x128xf32, #tpu.memory_space<vmem>>, vector<1x8x128xf32>
      %55 = vector.shape_cast %54 : vector<1x8x128xf32> to vector<8x128xf32>
      %56 = vector.shape_cast %53 : vector<8x128xf32> to vector<1x8x128xf32>
      tpu.vector_store %arg4[%c0_32, %c0_33, %c0_34], %56 {strides = array<i32>} : memref<1x8x128xf32, #tpu.memory_space<vmem>>, vector<1x8x128xf32>,
    } else {
    }
    %c0 = arith.constant 0 : index
    %c0_1 = arith.constant 0 : index
    %3 = vector.load %arg2[%c0, %c0_1] : memref<32x128xf32, #tpu.memory_space<vmem>>, vector<32x128xf32>
    %c0_2 = arith.constant 0 : index
    %c0_3 = arith.constant 0 : index
    %4 = vector.load %arg3[%c0_2, %c0_3] : memref<32x128xi8, #tpu.memory_space<vmem>>, vector<32x128xi8>
    %5 = arith.sitofp %4 : vector<32x128xi8> to vector<32x128xf32>
    %cst = arith.constant 1.000000e+00 : f32
    %6 = vector.broadcast %cst : f32 to vector<32x128xf32>
    %7 = arith.cmpf oeq, %5, %6 : vector<32x128xf32>
    %8 = arith.extui %7 : vector<32x128xi1> to vector<32x128xi32>
    %9 = arith.sitofp %8 : vector<32x128xi32> to vector<32x128xf32>
    %cst_4 = arith.constant -1.000000e+00 : f32
    %10 = vector.broadcast %cst_4 : f32 to vector<32x128xf32>
    %11 = arith.cmpf oeq, %5, %10 : vector<32x128xf32>
    %12 = arith.extui %11 : vector<32x128xi1> to vector<32x128xi32>
    %13 = arith.sitofp %12 : vector<32x128xi32> to vector<32x128xf32>
    %14 = arith.negf %3 : vector<32x128xf32>
    %15 = math.exp %14 : vector<32x128xf32>
    %cst_5 = arith.constant 1.000000e+00 : f32
    %16 = vector.broadcast %cst_5 : f32 to vector<32x128xf32>
    %17 = arith.addf %16, %15 : vector<32x128xf32>
    %18 = arith.divf %16, %17 : vector<32x128xf32>
    %c0_6 = arith.constant 0 : index
    %c0_7 = arith.constant 0 : index
    %c0_8 = arith.constant 0 : index
    %19 = vector.load %arg4[%c0_6, %c0_7, %c0_8] : memref<1x8x128xf32, #tpu.memory_space<vmem>>, vector<1x1x128xf32>
    %20 = vector.shape_cast %19 : vector<1x1x128xf32> to vector<1x128xf32>
    %cst_9 = arith.constant dense<0.000000e+00> : vector<128xf32>
    %21 = vector.multi_reduction <add>, %9, %cst_9 [0] : vector<32x128xf32> to vector<128xf32>
    %22 = vector.shape_cast %21 : vector<128xf32> to vector<1x128xf32>
    %23 = arith.addf %20, %22 : vector<1x128xf32>
    %c0_10 = arith.constant 0 : index
    %c0_11 = arith.constant 0 : index
    %c0_12 = arith.constant 0 : index
    %24 = vector.load %arg4[%c0_10, %c0_11, %c0_12] : memref<1x8x128xf32, #tpu.memory_space<vmem>>, vector<1x1x128xf32>
    %25 = vector.shape_cast %24 : vector<1x1x128xf32> to vector<1x128xf32>
    %26 = vector.shape_cast %23 : vector<1x128xf32> to vector<1x1x128xf32>
    tpu.vector_store %arg4[%c0_10, %c0_11, %c0_12], %26 {strides = array<i32>} : memref<1x8x128xf32, #tpu.memory_space<vmem>>, vector<1x1x128xf32>,
    %c0_13 = arith.constant 0 : index
    %c1 = arith.constant 1 : index
    %c0_14 = arith.constant 0 : index
    %27 = vector.load %arg4[%c0_13, %c1, %c0_14] : memref<1x8x128xf32, #tpu.memory_space<vmem>>, vector<1x1x128xf32>
    %28 = vector.shape_cast %27 : vector<1x1x128xf32> to vector<1x128xf32>
    %cst_15 = arith.constant dense<0.000000e+00> : vector<128xf32>
    %29 = vector.multi_reduction <add>, %13, %cst_15 [0] : vector<32x128xf32> to vector<128xf32>
    %30 = vector.shape_cast %29 : vector<128xf32> to vector<1x128xf32>
    %31 = arith.addf %28, %30 : vector<1x128xf32>
    %c0_16 = arith.constant 0 : index
    %c1_17 = arith.constant 1 : index
    %c0_18 = arith.constant 0 : index
    %32 = vector.load %arg4[%c0_16, %c1_17, %c0_18] : memref<1x8x128xf32, #tpu.memory_space<vmem>>, vector<1x1x128xf32>
    %33 = vector.shape_cast %32 : vector<1x1x128xf32> to vector<1x128xf32>
    %34 = vector.shape_cast %31 : vector<1x128xf32> to vector<1x1x128xf32>
    tpu.vector_store %arg4[%c0_16, %c1_17, %c0_18], %34 {strides = array<i32>} : memref<1x8x128xf32, #tpu.memory_space<vmem>>, vector<1x1x128xf32>,
    %c0_19 = arith.constant 0 : index
    %c2 = arith.constant 2 : index
    %c0_20 = arith.constant 0 : index
    %35 = vector.load %arg4[%c0_19, %c2, %c0_20] : memref<1x8x128xf32, #tpu.memory_space<vmem>>, vector<1x1x128xf32>
    %36 = vector.shape_cast %35 : vector<1x1x128xf32> to vector<1x128xf32>
    %37 = arith.mulf %13, %18 : vector<32x128xf32>
    %cst_21 = arith.constant dense<0.000000e+00> : vector<128xf32>
    %38 = vector.multi_reduction <add>, %37, %cst_21 [0] : vector<32x128xf32> to vector<128xf32>
    %39 = vector.shape_cast %38 : vector<128xf32> to vector<1x128xf32>
    %40 = arith.addf %36, %39 : vector<1x128xf32>
    %c0_22 = arith.constant 0 : index
    %c2_23 = arith.constant 2 : index
    %c0_24 = arith.constant 0 : index
    %41 = vector.load %arg4[%c0_22, %c2_23, %c0_24] : memref<1x8x128xf32, #tpu.memory_space<vmem>>, vector<1x1x128xf32>
    %42 = vector.shape_cast %41 : vector<1x1x128xf32> to vector<1x128xf32>
    %43 = vector.shape_cast %40 : vector<1x128xf32> to vector<1x1x128xf32>
    tpu.vector_store %arg4[%c0_22, %c2_23, %c0_24], %43 {strides = array<i32>} : memref<1x8x128xf32, #tpu.memory_space<vmem>>, vector<1x1x128xf32>,
    %c0_25 = arith.constant 0 : index
    %c3 = arith.constant 3 : index
    %c0_26 = arith.constant 0 : index
    %44 = vector.load %arg4[%c0_25, %c3, %c0_26] : memref<1x8x128xf32, #tpu.memory_space<vmem>>, vector<1x1x128xf32>
    %45 = vector.shape_cast %44 : vector<1x1x128xf32> to vector<1x128xf32>
    %46 = arith.mulf %9, %18 : vector<32x128xf32>
    %cst_27 = arith.constant dense<0.000000e+00> : vector<128xf32>
    %47 = vector.multi_reduction <add>, %46, %cst_27 [0] : vector<32x128xf32> to vector<128xf32>
    %48 = vector.shape_cast %47 : vector<128xf32> to vector<1x128xf32>
    %49 = arith.addf %45, %48 : vector<1x128xf32>
    %c0_28 = arith.constant 0 : index
    %c3_29 = arith.constant 3 : index
    %c0_30 = arith.constant 0 : index
    %50 = vector.load %arg4[%c0_28, %c3_29, %c0_30] : memref<1x8x128xf32, #tpu.memory_space<vmem>>, vector<1x1x128xf32>
    %51 = vector.shape_cast %50 : vector<1x1x128xf32> to vector<1x128xf32>
    %52 = vector.shape_cast %49 : vector<1x128xf32> to vector<1x1x128xf32>
    tpu.vector_store %arg4[%c0_28, %c3_29, %c0_30], %52 {strides = array<i32>} : memref<1x8x128xf32, #tpu.memory_space<vmem>>, vector<1x1x128xf32>,
    return
  }
  func.func @transform_0(%arg0: i32, %arg1: i32) -> (i32, i32) {
    %c1_i32 = arith.constant 1 : i32
    %0 = arith.muli %arg0, %c1_i32 : i32
    %1 = arith.addi %0, %arg1 : i32
    %c0_i32 = arith.constant 0 : i32
    %c0_i32_0 = arith.constant 0 : i32
    return %1, %c0_i32 : i32, i32
  }
  func.func @transform_1(%arg0: i32, %arg1: i32) -> (i32, i32) {
    %c1_i32 = arith.constant 1 : i32
    %0 = arith.muli %arg0, %c1_i32 : i32
    %1 = arith.addi %0, %arg1 : i32
    %c0_i32 = arith.constant 0 : i32
    %c0_i32_0 = arith.constant 0 : i32
    return %1, %c0_i32 : i32, i32
  }
  func.func @transform_2(%arg0: i32, %arg1: i32) -> (i32, i32, i32) {
    %c0_i32 = arith.constant 0 : i32
    %c0_i32_0 = arith.constant 0 : i32
    %c0_i32_1 = arith.constant 0 : i32
    return %arg0, %c0_i32, %c0_i32_0 : i32, i32, i32
  }
}

</mosaic_0001>

<llo_original>
// kernel: tpu_custom_call.1
$region0: #{tpu_custom_call.1}
  #allocation0 [shape = 'u32[]', space=smem, size = 0x4, offset = 0x4, fixed_abs, tag = 'smem constant byte address 0x4 - core index']
  #allocation1 [shape = 'u32[144,128]{1,0:T(1,128)}', space=vmem, size = 0x12000, scoped, tag = 'internal scratch']
  %s0 = inlined_call_operand.hbm [shape: f32[64,128], index: 0, kind: input, shape index: {}]
  %s1 = inlined_call_operand.hbm [shape: s8[64,128], index: 1, kind: input, shape index: {}]
  %s2 = inlined_call_operand.hbm [shape: f32[2,8,128], index: 2, kind: output, shape index: {}]
  %s3 = sld [smem:[#allocation0]]
  $region53: #{tpu_custom_call.1} parent=0
    _
  %s5 = ssub.s32 1, %s3
  %s6 = scalar_select 0, %s5, %s3
  $region1: #{tpu_custom_call.1} parent=0
    #allocation2 [shape = 'u8[32768]{0}', space=vmem, size = 0x8000, scoped, tag = 'input window, operand 0']
    #allocation3 [shape = 's32[2]{0}', space=sflag, size = 0x8, scoped, tag = 'scoped memory for tpu_custom_call.1']
    #allocation4 [shape = 's32[2]{0}', space=sflag, size = 0x8, scoped, tag = 'scoped memory for tpu_custom_call.1']
    #allocation5 [shape = 'u8[8192]{0}', space=vmem, size = 0x2000, scoped, tag = 'input window, operand 1']
    #allocation6 [shape = 's32[2]{0}', space=sflag, size = 0x8, scoped, tag = 'scoped memory for tpu_custom_call.1']
    #allocation7 [shape = 'u8[8192]{0}', space=vmem, size = 0x2000, scoped, tag = 'output window, operand 0']
    %7 = vsyncpa [#allocation3], 0
    %s8 = scalar_lea.sflag [#allocation3], 1
    %9 = vsyncpa %s8, 0
    %10 = vsyncpa [#allocation6], 0
    %s11 = scalar_lea.sflag [#allocation6], 1
    %12 = vsyncpa %s11, 0
    %13 = vsyncpa [#allocation4], 0
    %s14 = scalar_lea.sflag [#allocation4], 1
    %15 = vsyncpa %s14, 0
    loop: start=0, step=1, limit=4
    $region2: #{tpu_custom_call.1} parent=1 // loop_pre_header
      _
    $region3: #{tpu_custom_call.1} parent=1 // loop_header
      %s17 = sphi 0, %s21
      %p18 = scmp.ge.s32.totalorder %s17, 4
      %s24 = sphi 0, %s36
      %s25 = sphi 0, %s32
      %s26 = sphi 0, %s24
      %s27 = sphi 0, %s25
      %s28 = sphi 0, %s26
      %s29 = sphi 0, %s27
      %s41 = sphi 0, %s43
      %s44 = sphi 0, %s41
      %s45 = sphi 0, %s44
      %s61 = sphi 0, %s45
      %s69 = sphi 0, %s71
      %s72 = sphi 0, %s69
      %s73 = sphi 0, %s72
      %s89 = sphi 0, %s73
      %s95 = sphi 0, %s97
      %s98 = sphi 0, %s95
      %s99 = sphi 0, %s98
      %s115 = sphi 0, %s99
    $region4: #{tpu_custom_call.1} parent=1 // loop_header_branch
      %20 = sbr.rel (%p18) target = $region8
    $region5: #{tpu_custom_call.1} parent=1 // loop_body
      %s22 = ssub.s32 %s17, 1
      %s23 = ssub.s32 %s17, 2
      %s30 = sadd.s32 1, %s25
      %p31 = scmp.ge.s32.totalorder %s30, 1
      %s32 = scalar_select %p31, 0, %s30
      %s33 = sadd.s32 1, %s24
      %s34 = scalar_select %p31, %s33, %s24
      %p35 = scmp.ge.s32.totalorder %s34, 2
      %s36 = scalar_select %p35, 0, %s34
      %s37 = sadd.s32 %s24, %s25
      %s38 = sadd.s32 %s36, %s32
      %s39 = ssub.s32 %s37, %s38
      %p40 = scmp.eq.s32.totalorder %s39, 0
      %s42 = sadd.s32 %s41, 1
      %s43 = scalar_select %p40, %s41, %s42
      %p46 = pneg %p40
      %p47 = scmp.eq.s32.totalorder %s17, 1
      %p48 = por %p46, %p47
      %p49 = scmp.ne.s32.totalorder %s41, %s44
      %p50 = scmp.eq.s32.totalorder %s17, 0
      %p51 = por %p49, %p50
      %p52 = scmp.ne.s32.totalorder %s41, %s44
      %p53 = scmp.eq.s32.totalorder %s22, 1
      %p54 = por %p52, %p53
      %p55 = scmp.ne.s32.totalorder %s44, %s45
      %p56 = scmp.eq.s32.totalorder %s22, 0
      %p57 = por %p55, %p56
      %p58 = scmp.ne.s32.totalorder %s44, %s45
      %p59 = scmp.eq.s32.totalorder %s23, 1
      %p60 = por %p58, %p59
      %p62 = scmp.ne.s32.totalorder %s45, %s61
      %p63 = scmp.eq.s32.totalorder %s23, 0
      %p64 = por %p62, %p63
      %s65 = sadd.s32 %s24, %s25
      %s66 = sadd.s32 %s36, %s32
      %s67 = ssub.s32 %s65, %s66
      %p68 = scmp.eq.s32.totalorder %s67, 0
      %s70 = sadd.s32 %s69, 1
      %s71 = scalar_select %p68, %s69, %s70
      %p74 = pneg %p68
      %p75 = scmp.eq.s32.totalorder %s17, 1
      %p76 = por %p74, %p75
      %p77 = scmp.ne.s32.totalorder %s69, %s72
      %p78 = scmp.eq.s32.totalorder %s17, 0
      %p79 = por %p77, %p78
      %p80 = scmp.ne.s32.totalorder %s69, %s72
      %p81 = scmp.eq.s32.totalorder %s22, 1
      %p82 = por %p80, %p81
      %p83 = scmp.ne.s32.totalorder %s72, %s73
      %p84 = scmp.eq.s32.totalorder %s22, 0
      %p85 = por %p83, %p84
      %p86 = scmp.ne.s32.totalorder %s72, %s73
      %p87 = scmp.eq.s32.totalorder %s23, 1
      %p88 = por %p86, %p87
      %p90 = scmp.ne.s32.totalorder %s73, %s89
      %p91 = scmp.eq.s32.totalorder %s23, 0
      %p92 = por %p90, %p91
      %s93 = ssub.s32 %s24, %s36
      %p94 = scmp.eq.s32.totalorder %s93, 0
      %s96 = sadd.s32 %s95, 1
      %s97 = scalar_select %p94, %s95, %s96
      %p100 = pneg %p94
      %p101 = scmp.eq.s32.totalorder %s17, 1
      %p102 = por %p100, %p101
      %p103 = scmp.ne.s32.totalorder %s95, %s98
      %p104 = scmp.eq.s32.totalorder %s17, 0
      %p105 = por %p103, %p104
      %p106 = scmp.ne.s32.totalorder %s95, %s98
      %p107 = scmp.eq.s32.totalorder %s22, 1
      %p108 = por %p106, %p107
      %p109 = scmp.ne.s32.totalorder %s98, %s99
      %p110 = scmp.eq.s32.totalorder %s22, 0
      %p111 = por %p109, %p110
      %p112 = scmp.ne.s32.totalorder %s98, %s99
      %p113 = scmp.eq.s32.totalorder %s23, 1
      %p114 = por %p112, %p113
      %p116 = scmp.ne.s32.totalorder %s99, %s115
      %p117 = scmp.eq.s32.totalorder %s23, 0
      %p118 = por %p116, %p117
      %p119 = scmp.le.s32.totalorder 1, %s17
      %p120 = scmp.lt.s32.totalorder %s17, 3
      %p121 = pnand %p119, %p120
      %p122 = pneg %p121
      // Predicated region
      $region9: #{tpu_custom_call.1} parent=5 // pred_check
        _
      $region10: #{tpu_custom_call.1} parent=5 // pred_check_branch
        %124 = sbr.rel (%p121) target = $region12
      $region11: #{tpu_custom_call.1} parent=5 // pred_region
        %s125 = ssub.s32 %s17, 1
      $region12: #{tpu_custom_call.1} parent=5 // pred_fallthru
        _
      %p126 = scmp.lt.s32.totalorder %s17, 2
      // Predicated region
      $region13: #{tpu_custom_call.1} parent=5 // pred_check
        %p127 = pneg %p126
      $region14: #{tpu_custom_call.1} parent=5 // pred_check_branch
        %129 = sbr.rel (%p127) target = $region16
      $region15: #{tpu_custom_call.1} parent=5 // pred_region
        // Predicated region
        $region17: #{tpu_custom_call.1} parent=15 // pred_check
          %p130 = pneg %p51
        $region18: #{tpu_custom_call.1} parent=15 // pred_check_branch
          %132 = sbr.rel (%p130) target = $region20
        $region19: #{tpu_custom_call.1} parent=15 // pred_region
          %s133 = sand.u32 %s41, 1
          %s134 = scalar_lea.sflag [#allocation3], %s133
          %s135 = sand.u32 %s41, 1
          %s136 = smul.addr %s135, 32
          %s137 = scalar_lea.vmem [#allocation2], %s136
          %s138 = sadd.s32 %s24, %s25
          %s139 = smul.u32 4, %s138
          %s141 = ssub.s32 512, 512
          %142 = vsyncadd %s134, %s141
          %s143 = smul.addr %s139, 128
          %s144 = scalar_lea.hbm %s0, %s143
          %s145 = sshll.u32 %s137, 4
          %s146 = int_to_ptr.vmem [resolvable:$true] %s145
          %151 = dma.hbm_to_vmem [thread:$0]  %s144, 512, %s146, %s134, 128, 128, 8
        $region20: #{tpu_custom_call.1} parent=15 // pred_fallthru
          _
        // Predicated region
        $region21: #{tpu_custom_call.1} parent=15 // pred_check
          %p152 = pneg %p79
        $region22: #{tpu_custom_call.1} parent=15 // pred_check_branch
          %154 = sbr.rel (%p152) target = $region24
        $region23: #{tpu_custom_call.1} parent=15 // pred_region
          %s155 = sand.u32 %s69, 1
          %s156 = scalar_lea.sflag [#allocation6], %s155
          %s157 = sand.u32 %s69, 1
          %s158 = smul.addr %s157, 8
          %s159 = scalar_lea.vmem [#allocation5], %s158
          %s160 = sadd.s32 %s24, %s25
          %s162 = ssub.s32 128, 128
          %163 = vsyncadd %s156, %s162
          %s164 = smul.addr %s160, 128
          %s165 = scalar_lea.hbm %s1, %s164
          %s167 = sshll.u32 %s159, 4
          %s168 = int_to_ptr.vmem [resolvable:$true] %s167
          %170 = dma.hbm_to_vmem [thread:$0]  %s165, 128, %s168, %s156
        $region24: #{tpu_custom_call.1} parent=15 // pred_fallthru
          _
      $region16: #{tpu_custom_call.1} parent=5 // pred_fallthru
        _
      %p171 = scmp.le.s32.totalorder 1, %s17
      %p172 = scmp.lt.s32.totalorder %s17, 3
      %p173 = pnand %p171, %p172
      %p174 = pneg %p173
      // Predicated region
      $region25: #{tpu_custom_call.1} parent=5 // pred_check
        _
      $region26: #{tpu_custom_call.1} parent=5 // pred_check_branch
        %176 = sbr.rel (%p173) target = $region28
      $region27: #{tpu_custom_call.1} parent=5 // pred_region
        %s177 = ssub.s32 %s17, 1
        %s178 = sand.u32 %s44, 1
        %s179 = scalar_lea.sflag [#allocation3], %s178
        %s180 = sand.u32 %s44, 1
        %s181 = smul.addr %s180, 32
        %s182 = scalar_lea.vmem [#allocation2], %s181
        // Predicated region
        $region29: #{tpu_custom_call.1} parent=27 // pred_check
          %p183 = pneg %p57
        $region30: #{tpu_custom_call.1} parent=27 // pred_check_branch
          %185 = sbr.rel (%p183) target = $region32
        $region31: #{tpu_custom_call.1} parent=27 // pred_region
          %186 = dma.done %s179, 512
        $region32: #{tpu_custom_call.1} parent=27 // pred_fallthru
          _
        %s187 = sand.u32 %s72, 1
        %s188 = scalar_lea.sflag [#allocation6], %s187
        %s189 = sand.u32 %s72, 1
        %s190 = smul.addr %s189, 8
        %s191 = scalar_lea.vmem [#allocation5], %s190
        // Predicated region
        $region33: #{tpu_custom_call.1} parent=27 // pred_check
          %p192 = pneg %p85
        $region34: #{tpu_custom_call.1} parent=27 // pred_check_branch
          %194 = sbr.rel (%p192) target = $region36
        $region35: #{tpu_custom_call.1} parent=27 // pred_region
          %195 = dma.done %s188, 128
        $region36: #{tpu_custom_call.1} parent=27 // pred_fallthru
          _
        %s196 = sand.u32 %s44, 1
        %s197 = scalar_lea.sflag [#allocation3], %s196
        %s198 = sand.u32 %s44, 1
        %s199 = smul.addr %s198, 32
        %s200 = scalar_lea.vmem [#allocation2], %s199
        %p201 = pneg %p57
        %p202 = pneg %p54
        %s203 = sand.u32 %s72, 1
        %s204 = scalar_lea.sflag [#allocation6], %s203
        %s205 = sand.u32 %s72, 1
        %s206 = smul.addr %s205, 8
        %s207 = scalar_lea.vmem [#allocation5], %s206
        %p208 = pneg %p85
        %p209 = pneg %p82
        %p210 = pneg %p111
        %p211 = pneg %p108
        %s212 = sand.u32 %s98, 1
        %s213 = scalar_lea.sflag [#allocation4], %s212
        %s214 = sand.u32 %s98, 1
        %s215 = smul.addr %s214, 8
        %s216 = scalar_lea.vmem [#allocation7], %s215
        %s217 = sadd.s32 %s26, %s27
        %s218 = smul.u32 4, %s217
        %s219 = sadd.s32 %s26, %s27
        %p220 = scmp.eq.s32.totalorder %s27, 0
        // Predicated region
        $region37: #{tpu_custom_call.1} parent=27 // pred_check
          %p221 = pneg %p220
        $region38: #{tpu_custom_call.1} parent=27 // pred_check_branch
          %223 = sbr.rel (%p221) target = $region40
        $region39: #{tpu_custom_call.1} parent=27 // pred_region
          %224 = vst [vmem:[%s216] sm:$0xff] 0.0
        $region40: #{tpu_custom_call.1} parent=27 // pred_fallthru
          _
        %v225 = vld [vmem:[%s182] sm:$0xff]
        %v226 = vld [vmem:[%s182 + $0x8] sm:$0xff]
        %v227 = vld [vmem:[%s182 + $0x10] sm:$0xff]
        %v228 = vld [vmem:[%s182 + $0x18] sm:$0xff]
        %v229 = vld [vmem:[%s191] sm:$0xff]
        %v230 = vunpack.c.0.s8 %v229
        %v231 = vunpack.c.1.s8 %v229
        %v232 = vunpack.c.2.s8 %v229
        %v233 = vunpack.c.3.s8 %v229
        %v234 = vcvt.s32.f32 %v230
        %v235 = vcvt.s32.f32 %v231
        %v236 = vcvt.s32.f32 %v232
        %v237 = vcvt.s32.f32 %v233
        %vm238 = vcmp.eq.f32.partialorder %v234, 1.0
        %vm239 = vcmp.eq.f32.partialorder %v235, 1.0
        %vm240 = vcmp.eq.f32.partialorder %v236, 1.0
        %vm241 = vcmp.eq.f32.partialorder %v237, 1.0
        %v242 = vsel %vm238, 1, 0
        %v243 = vsel %vm239, 1, 0
        %v244 = vsel %vm240, 1, 0
        %v245 = vsel %vm241, 1, 0
        %v246 = vcvt.s32.f32 %v242
        %v247 = vcvt.s32.f32 %v243
        %v248 = vcvt.s32.f32 %v244
        %v249 = vcvt.s32.f32 %v245
        %vm250 = vcmp.eq.f32.partialorder %v234, -1.0
        %vm251 = vcmp.eq.f32.partialorder %v235, -1.0
        %vm252 = vcmp.eq.f32.partialorder %v236, -1.0
        %vm253 = vcmp.eq.f32.partialorder %v237, -1.0
        %v254 = vsel %vm250, 1, 0
        %v255 = vsel %vm251, 1, 0
        %v256 = vsel %vm252, 1, 0
        %v257 = vsel %vm253, 1, 0
        %v258 = vcvt.s32.f32 %v254
        %v259 = vcvt.s32.f32 %v255
        %v260 = vcvt.s32.f32 %v256
        %v261 = vcvt.s32.f32 %v257
        %v262 = vxor.u32 %v225, 2147483648
        %v263 = vxor.u32 %v226, 2147483648
        %v264 = vxor.u32 %v227, 2147483648
        %v265 = vxor.u32 %v228, 2147483648
        %v266 = vmul.f32 %v262, 1.442695
        %v267 = vpow.pop %v266
        %v268 = vmul.f32 %v263, 1.442695
        %v269 = vpow.pop %v268
        %v270 = vmul.f32 %v264, 1.442695
        %v271 = vpow.pop %v270
        %v272 = vmul.f32 %v265, 1.442695
        %v273 = vpow.pop %v272
        %v274 = vadd.f32 %v267, 1.0
        %v275 = vadd.f32 %v269, 1.0
        %v276 = vadd.f32 %v271, 1.0
        %v277 = vadd.f32 %v273, 1.0
        %v278 = vrcp.pop %v274
        %v279 = vmul.f32 1.0, %v278
        %v280 = vrcp.pop %v275
        %v281 = vmul.f32 1.0, %v280
        %v282 = vrcp.pop %v276
        %v283 = vmul.f32 1.0, %v282
        %v284 = vrcp.pop %v277
        %v285 = vmul.f32 1.0, %v284
        %v286 = vld [vmem:[%s216] sm:$0x1]
        %v287 = vadd.f32 %v246, %v247
        %v288 = vadd.f32 %v287, %v248
        %v289 = vadd.f32 %v288, %v249
        %v290 = vrot.slane %v289, 4
        %v291 = vadd.f32 %v289, %v290
        %v292 = vrot.slane %v291, 2
        %v293 = vadd.f32 %v291, %v292
        %v294 = vrot.slane %v293, 1
        %v295 = vadd.f32 %v293, %v294
        %v296 = vadd.f32 %v286, %v295
        %297 = vst [vmem:[%s216] sm:$0x1] %v296
        %v298 = vld [vmem:[%s216 + $0x1] sm:$0x1]
        %v299 = vadd.f32 %v258, %v259
        %v300 = vadd.f32 %v299, %v260
        %v301 = vadd.f32 %v300, %v261
        %v302 = vrot.slane %v301, 4
        %v303 = vadd.f32 %v301, %v302
        %v304 = vrot.slane %v303, 2
        %v305 = vadd.f32 %v303, %v304
        %v306 = vrot.slane %v305, 1
        %v307 = vadd.f32 %v305, %v306
        %v308 = vadd.f32 %v298, %v307
        %309 = vst [vmem:[%s216 + $0x1] sm:$0x1] %v308
        %v310 = vld [vmem:[%s216 + $0x2] sm:$0x1]
        %v311 = vmul.f32 %v258, %v279
        %v312 = vmul.f32 %v259, %v281
        %v313 = vmul.f32 %v260, %v283
        %v314 = vmul.f32 %v261, %v285
        %v315 = vadd.f32 %v311, %v312
        %v316 = vadd.f32 %v315, %v313
        %v317 = vadd.f32 %v316, %v314
        %v318 = vrot.slane %v317, 4
        %v319 = vadd.f32 %v317, %v318
        %v320 = vrot.slane %v319, 2
        %v321 = vadd.f32 %v319, %v320
        %v322 = vrot.slane %v321, 1
        %v323 = vadd.f32 %v321, %v322
        %v324 = vadd.f32 %v310, %v323
        %325 = vst [vmem:[%s216 + $0x2] sm:$0x1] %v324
        %v326 = vld [vmem:[%s216 + $0x3] sm:$0x1]
        %v327 = vmul.f32 %v246, %v279
        %v328 = vmul.f32 %v247, %v281
        %v329 = vmul.f32 %v248, %v283
        %v330 = vmul.f32 %v249, %v285
        %v331 = vadd.f32 %v327, %v328
        %v332 = vadd.f32 %v331, %v329
        %v333 = vadd.f32 %v332, %v330
        %v334 = vrot.slane %v333, 4
        %v335 = vadd.f32 %v333, %v334
        %v336 = vrot.slane %v335, 2
        %v337 = vadd.f32 %v335, %v336
        %v338 = vrot.slane %v337, 1
        %v339 = vadd.f32 %v337, %v338
        %v340 = vadd.f32 %v326, %v339
        %341 = vst [vmem:[%s216 + $0x3] sm:$0x1] %v340
        %s342 = sand.u32 %s98, 1
        %s343 = scalar_lea.sflag [#allocation4], %s342
        %s344 = sand.u32 %s98, 1
        %s345 = smul.addr %s344, 8
        %s346 = scalar_lea.vmem [#allocation7], %s345
        // Predicated region
        $region41: #{tpu_custom_call.1} parent=27 // pred_check
          %p347 = pneg %p108
        $region42: #{tpu_custom_call.1} parent=27 // pred_check_branch
          %349 = sbr.rel (%p347) target = $region44
        $region43: #{tpu_custom_call.1} parent=27 // pred_region
          %s351 = ssub.s32 128, 128
          %352 = vsyncadd %s343, %s351
          %s353 = smul.addr %s26, 128
          %s354 = scalar_lea.hbm %s2, %s353
          %s356 = sshll.u32 %s346, 4
          %s357 = int_to_ptr.vmem [resolvable:$true] %s356
          %359 = dma.vmem_to_hbm [thread:$0]  %s357, 128, %s354, %s343
        $region44: #{tpu_custom_call.1} parent=27 // pred_fallthru
          _
      $region28: #{tpu_custom_call.1} parent=5 // pred_fallthru
        _
      %p360 = scmp.le.s32.totalorder 2, %s17
      // Predicated region
      $region45: #{tpu_custom_call.1} parent=5 // pred_check
        %p361 = pneg %p360
      $region46: #{tpu_custom_call.1} parent=5 // pred_check_branch
        %363 = sbr.rel (%p361) target = $region48
      $region47: #{tpu_custom_call.1} parent=5 // pred_region
        %s364 = ssub.s32 %s17, 2
        // Predicated region
        $region49: #{tpu_custom_call.1} parent=47 // pred_check
          %p365 = pneg %p114
        $region50: #{tpu_custom_call.1} parent=47 // pred_check_branch
          %367 = sbr.rel (%p365) target = $region52
        $region51: #{tpu_custom_call.1} parent=47 // pred_region
          %s368 = sand.u32 %s99, 1
          %s369 = scalar_lea.sflag [#allocation4], %s368
          %s370 = sand.u32 %s99, 1
          %s371 = smul.addr %s370, 8
          %s372 = scalar_lea.vmem [#allocation7], %s371
          %373 = dma.done %s369, 128
        $region52: #{tpu_custom_call.1} parent=47 // pred_fallthru
          _
      $region48: #{tpu_custom_call.1} parent=5 // pred_fallthru
        _
    $region6: #{tpu_custom_call.1} parent=1 // loop_footer
      %s21 = sadd.s32 1, %s17
    $region7: #{tpu_custom_call.1} parent=1 // loop_footer_branch
      %16 = sbr.rel target = $region3
    $region8: #{tpu_custom_call.1} parent=1 // loop_exit
      _
    %374 = vsyncpa [#allocation3], 1
    %s375 = scalar_lea.sflag [#allocation3], 1
    %376 = vsyncpa %s375, 1
    %377 = vsyncpa [#allocation6], 1
    %s378 = scalar_lea.sflag [#allocation6], 1
    %379 = vsyncpa %s378, 1
    %380 = vsyncpa [#allocation4], 1
    %s381 = scalar_lea.sflag [#allocation4], 1
    %382 = vsyncpa %s381, 1

</llo_original>
